<compile_context>
chip_gen: v6e
topology: v6e:2x2x1
jax: 0.10.0
libtpu: 0.0.40
codegen_flags: <defaults>
</compile_context>

<pallas_src>
import jax
import jax.numpy as jnp
from jax.experimental import pallas as pl
from jax.experimental.pallas import tpu as pltpu


# (fan_in, fan_out) of each nn.Linear in the PyTorch module.
_LAYER_DIMS = [(6, 10), (10, 6), (6, 3), (3, 1)]
_LANE = 128


def _mlp_kernel(x_ref,
                w1_ref, b1_ref,
                w2_ref, b2_ref,
                w3_ref, b3_ref,
                w4_ref, b4_ref,
                o_ref):
    """One (features, TB) batch tile, computed entirely on the VPU/EUP.

    x_ref : (6, TB) f32       (batch on the lane axis)
    wN_ref: (out, in) f32     (PyTorch nn.Linear layout, VMEM-resident)
    bN_ref: (out, 1)  f32
    o_ref : (1, TB) f32       (lane-dense, unmasked store)
    """
    h = x_ref[...]                                   # (6, TB)

    def dense_sigmoid(h, w_ref, b_ref):
        w = w_ref[...]                               # (out, in) -- a few hundred bytes
        b = b_ref[...]                               # (out, 1)
        in_f = w.shape[1]
        # z[o, :] = b[o] + sum_k w[o, k] * h[k, :]
        # Fully unrolled broadcast MACs on the VPU; feature dims <= 10, so
        # this is ~141 MACs per batch element across all 4 layers.
        z = w[:, 0:1] * h[0:1, :] + b                # (out, TB)
        for k in range(1, in_f):
            z = z + w[:, k:k + 1] * h[k:k + 1, :]
        return jax.nn.sigmoid(z)                     # transcendental -> EUP slot

    h = dense_sigmoid(h, w1_ref, b1_ref)             # (10, TB)
    h = dense_sigmoid(h, w2_ref, b2_ref)             # (6,  TB)
    h = dense_sigmoid(h, w3_ref, b3_ref)             # (3,  TB)
    h = dense_sigmoid(h, w4_ref, b4_ref)             # (1,  TB)

    o_ref[...] = h.astype(o_ref.dtype)               # lane-dense (1, TB) store


def mlp_forward(x, params, *, tile_b=8192):
    """x: (B, 6) float32. Returns (B, 1) float32."""
    B, F = x.shape
    assert F == 6, f"expected 6 input features, got {F}"

    # Clamp the batch tile: at least one lane group (128), no wider than the
    # lane-padded batch (avoids wasted work for tiny batches).
    tile_b = max(_LANE, min(tile_b, _LANE * pl.cdiv(B, _LANE)))
    n_blocks = pl.cdiv(B, tile_b)
    b_pad = n_blocks * tile_b

    # (features, batch) layout: batch on the 128-lane axis.  The wrapper-side
    # transpose/pad is layout plumbing so the kernel sees lane-dense tiles.
    xt = x.T                                         # (6, B)
    if b_pad != B:
        xt = jnp.pad(xt, ((0, 0), (0, b_pad - B)))   # padded cols are dropped later

    w1, b1 = params["w1"], params["b1"].reshape(-1, 1)
    w2, b2 = params["w2"], params["b2"].reshape(-1, 1)
    w3, b3 = params["w3"], params["b3"].reshape(-1, 1)
    w4, b4 = params["w4"], params["b4"].reshape(-1, 1)

    def resident(a):
        # Full-array block + constant index map -> DMA'd once, stays resident
        # in VMEM across every grid step.
        return pl.BlockSpec(a.shape, lambda i: (0, 0))

    out_t = pl.pallas_call(
        _mlp_kernel,
        out_shape=jax.ShapeDtypeStruct((1, b_pad), jnp.float32),
        grid=(n_blocks,),
        in_specs=[pl.BlockSpec((6, tile_b), lambda i: (0, i)),
                  resident(w1), resident(b1),
                  resident(w2), resident(b2),
                  resident(w3), resident(b3),
                  resident(w4), resident(b4)],
        out_specs=pl.BlockSpec((1, tile_b), lambda i: (0, i)),
        compiler_params=pltpu.CompilerParams(
            dimension_semantics=("parallel",)),      # megacore sharding on v7x
    )(xt, w1, b1, w2, b2, w3, b3, w4, b4)

    # (1, b_pad) -> (B, 1): slice off lane padding; reshape (free) instead of
    # a transpose op.
    return out_t[0, :B].reshape(B, 1)


def init_params(key):
    """Deterministic init matching nn.Linear: weight (out, in), bias (out,)."""
    params = {}
    for i, (fan_in, fan_out) in enumerate(_LAYER_DIMS, start=1):
        key, kw, kb = jax.random.split(key, 3)
        bound = float(fan_in) ** -0.5
        params[f"w{i}"] = jax.random.uniform(
            kw, (fan_out, fan_in), jnp.float32, -bound, bound)
        params[f"b{i}"] = jax.random.uniform(
            kb, (fan_out,), jnp.float32, -bound, bound)
    return params


def reference_forward(x, params):
    h = x
    for i in range(1, 5):
        h = jax.nn.sigmoid(h @ params[f"w{i}"].T + params[f"b{i}"])
    return h


if __name__ == "__main__":
    key = jax.random.PRNGKey(0)
    key, kx1, kx2 = jax.random.split(key, 3)
    params = init_params(key)

    fwd = jax.jit(mlp_forward)

    # Small batch (single grid step after lane padding).
    batch = 8
    x = jax.random.normal(kx1, (batch, 6), jnp.float32)
    y = jax.block_until_ready(fwd(x, params))
    y_ref = reference_forward(x, params)
    assert y.shape == (batch, 1)
    assert jnp.allclose(y, y_ref, atol=1e-5, rtol=1e-5), (y, y_ref)

    # Larger batch with an explicit small tile to exercise the multi-block
    # grid, pipelining, and the padded final block.
    batch2 = 300
    x2 = jax.random.normal(kx2, (batch2, 6), jnp.float32)
    y2 = jax.block_until_ready(mlp_forward(x2, params, tile_b=128))
    y2_ref = reference_forward(x2, params)
    assert y2.shape == (batch2, 1)
    assert jnp.allclose(y2, y2_ref, atol=1e-5, rtol=1e-5), (y2, y2_ref)

    print("KERNEL_OK")
</pallas_src>

<mosaic_0001>
module attributes {stable_mosaic.version = 11 : i64} {
  func.func @_mlp_kernel(%arg0: i32, %arg1: memref<6x128xf32, #tpu.memory_space<vmem>>, %arg2: memref<10x6xf32, #tpu.memory_space<vmem>>, %arg3: memref<10x1xf32, #tpu.memory_space<vmem>>, %arg4: memref<6x10xf32, #tpu.memory_space<vmem>>, %arg5: memref<6x1xf32, #tpu.memory_space<vmem>>, %arg6: memref<3x6xf32, #tpu.memory_space<vmem>>, %arg7: memref<3x1xf32, #tpu.memory_space<vmem>>, %arg8: memref<1x3xf32, #tpu.memory_space<vmem>>, %arg9: memref<1x1xf32, #tpu.memory_space<vmem>>, %arg10: memref<1x128xf32, #tpu.memory_space<vmem>>) attributes {dimension_semantics = [#tpu.dimension_semantics<parallel>], iteration_bounds = array<i64: 1>, scalar_prefetch = 0 : i64, scratch_operands = 0 : i64, tpu.core_type = #tpu.core_type<tc>, window_params = [{transform_indices = @transform_0, window_bounds = array<i64: 6, 128>}, {pipeline_mode = #tpu.pipeline_mode<synchronous>, transform_indices = @transform_1, window_bounds = array<i64: 10, 6>}, {pipeline_mode = #tpu.pipeline_mode<synchronous>, transform_indices = @transform_2, window_bounds = array<i64: 10, 1>}, {pipeline_mode = #tpu.pipeline_mode<synchronous>, transform_indices = @transform_3, window_bounds = array<i64: 6, 10>}, {pipeline_mode = #tpu.pipeline_mode<synchronous>, transform_indices = @transform_4, window_bounds = array<i64: 6, 1>}, {pipeline_mode = #tpu.pipeline_mode<synchronous>, transform_indices = @transform_5, window_bounds = array<i64: 3, 6>}, {pipeline_mode = #tpu.pipeline_mode<synchronous>, transform_indices = @transform_6, window_bounds = array<i64: 3, 1>}, {pipeline_mode = #tpu.pipeline_mode<synchronous>, transform_indices = @transform_7, window_bounds = array<i64: 1, 3>}, {pipeline_mode = #tpu.pipeline_mode<synchronous>, transform_indices = @transform_8, window_bounds = array<i64: 1, 1>}, {transform_indices = @transform_9, window_bounds = array<i64: 1, 128>}]} {
    %c0 = arith.constant 0 : index
    %c0_0 = arith.constant 0 : index
    %0 = vector.load %arg1[%c0, %c0_0] : memref<6x128xf32, #tpu.memory_space<vmem>>, vector<6x128xf32>
    %c0_1 = arith.constant 0 : index
    %c0_2 = arith.constant 0 : index
    %1 = vector.load %arg2[%c0_1, %c0_2] : memref<10x6xf32, #tpu.memory_space<vmem>>, vector<10x6xf32>
    %c0_3 = arith.constant 0 : index
    %c0_4 = arith.constant 0 : index
    %2 = vector.load %arg3[%c0_3, %c0_4] : memref<10x1xf32, #tpu.memory_space<vmem>>, vector<10x1xf32>
    %3 = vector.extract_strided_slice %1 {offsets = [0, 0], sizes = [10, 1], strides = [1, 1]} : vector<10x6xf32> to vector<10x1xf32>
    %4 = vector.extract_strided_slice %0 {offsets = [0, 0], sizes = [1, 128], strides = [1, 1]} : vector<6x128xf32> to vector<1x128xf32>
    %5 = vector.broadcast %3 : vector<10x1xf32> to vector<10x128xf32>
    %6 = vector.broadcast %4 : vector<1x128xf32> to vector<10x128xf32>
    %7 = arith.mulf %5, %6 : vector<10x128xf32>
    %8 = vector.broadcast %2 : vector<10x1xf32> to vector<10x128xf32>
    %9 = arith.addf %7, %8 : vector<10x128xf32>
    %10 = vector.extract_strided_slice %1 {offsets = [0, 1], sizes = [10, 1], strides = [1, 1]} : vector<10x6xf32> to vector<10x1xf32>
    %11 = vector.extract_strided_slice %0 {offsets = [1, 0], sizes = [1, 128], strides = [1, 1]} : vector<6x128xf32> to vector<1x128xf32>
    %12 = vector.broadcast %10 : vector<10x1xf32> to vector<10x128xf32>
    %13 = vector.broadcast %11 : vector<1x128xf32> to vector<10x128xf32>
    %14 = arith.mulf %12, %13 : vector<10x128xf32>
    %15 = arith.addf %9, %14 : vector<10x128xf32>
    %16 = vector.extract_strided_slice %1 {offsets = [0, 2], sizes = [10, 1], strides = [1, 1]} : vector<10x6xf32> to vector<10x1xf32>
    %17 = vector.extract_strided_slice %0 {offsets = [2, 0], sizes = [1, 128], strides = [1, 1]} : vector<6x128xf32> to vector<1x128xf32>
    %18 = vector.broadcast %16 : vector<10x1xf32> to vector<10x128xf32>
    %19 = vector.broadcast %17 : vector<1x128xf32> to vector<10x128xf32>
    %20 = arith.mulf %18, %19 : vector<10x128xf32>
    %21 = arith.addf %15, %20 : vector<10x128xf32>
    %22 = vector.extract_strided_slice %1 {offsets = [0, 3], sizes = [10, 1], strides = [1, 1]} : vector<10x6xf32> to vector<10x1xf32>
    %23 = vector.extract_strided_slice %0 {offsets = [3, 0], sizes = [1, 128], strides = [1, 1]} : vector<6x128xf32> to vector<1x128xf32>
    %24 = vector.broadcast %22 : vector<10x1xf32> to vector<10x128xf32>
    %25 = vector.broadcast %23 : vector<1x128xf32> to vector<10x128xf32>
    %26 = arith.mulf %24, %25 : vector<10x128xf32>
    %27 = arith.addf %21, %26 : vector<10x128xf32>
    %28 = vector.extract_strided_slice %1 {offsets = [0, 4], sizes = [10, 1], strides = [1, 1]} : vector<10x6xf32> to vector<10x1xf32>
    %29 = vector.extract_strided_slice %0 {offsets = [4, 0], sizes = [1, 128], strides = [1, 1]} : vector<6x128xf32> to vector<1x128xf32>
    %30 = vector.broadcast %28 : vector<10x1xf32> to vector<10x128xf32>
    %31 = vector.broadcast %29 : vector<1x128xf32> to vector<10x128xf32>
    %32 = arith.mulf %30, %31 : vector<10x128xf32>
    %33 = arith.addf %27, %32 : vector<10x128xf32>
    %34 = vector.extract_strided_slice %1 {offsets = [0, 5], sizes = [10, 1], strides = [1, 1]} : vector<10x6xf32> to vector<10x1xf32>
    %35 = vector.extract_strided_slice %0 {offsets = [5, 0], sizes = [1, 128], strides = [1, 1]} : vector<6x128xf32> to vector<1x128xf32>
    %36 = vector.broadcast %34 : vector<10x1xf32> to vector<10x128xf32>
    %37 = vector.broadcast %35 : vector<1x128xf32> to vector<10x128xf32>
    %38 = arith.mulf %36, %37 : vector<10x128xf32>
    %39 = arith.addf %33, %38 : vector<10x128xf32>
    %40 = arith.negf %39 : vector<10x128xf32>
    %41 = math.exp %40 : vector<10x128xf32>
    %cst = arith.constant 1.000000e+00 : f32
    %42 = vector.broadcast %cst : f32 to vector<10x128xf32>
    %43 = arith.addf %42, %41 : vector<10x128xf32>
    %44 = arith.divf %42, %43 : vector<10x128xf32>
    %c0_5 = arith.constant 0 : index
    %c0_6 = arith.constant 0 : index
    %45 = vector.load %arg4[%c0_5, %c0_6] : memref<6x10xf32, #tpu.memory_space<vmem>>, vector<6x10xf32>
    %c0_7 = arith.constant 0 : index
    %c0_8 = arith.constant 0 : index
    %46 = vector.load %arg5[%c0_7, %c0_8] : memref<6x1xf32, #tpu.memory_space<vmem>>, vector<6x1xf32>
    %47 = vector.extract_strided_slice %45 {offsets = [0, 0], sizes = [6, 1], strides = [1, 1]} : vector<6x10xf32> to vector<6x1xf32>
    %48 = vector.extract_strided_slice %44 {offsets = [0, 0], sizes = [1, 128], strides = [1, 1]} : vector<10x128xf32> to vector<1x128xf32>
    %49 = vector.broadcast %47 : vector<6x1xf32> to vector<6x128xf32>
    %50 = vector.broadcast %48 : vector<1x128xf32> to vector<6x128xf32>
    %51 = arith.mulf %49, %50 : vector<6x128xf32>
    %52 = vector.broadcast %46 : vector<6x1xf32> to vector<6x128xf32>
    %53 = arith.addf %51, %52 : vector<6x128xf32>
    %54 = vector.extract_strided_slice %45 {offsets = [0, 1], sizes = [6, 1], strides = [1, 1]} : vector<6x10xf32> to vector<6x1xf32>
    %55 = vector.extract_strided_slice %44 {offsets = [1, 0], sizes = [1, 128], strides = [1, 1]} : vector<10x128xf32> to vector<1x128xf32>
    %56 = vector.broadcast %54 : vector<6x1xf32> to vector<6x128xf32>
    %57 = vector.broadcast %55 : vector<1x128xf32> to vector<6x128xf32>
    %58 = arith.mulf %56, %57 : vector<6x128xf32>
    %59 = arith.addf %53, %58 : vector<6x128xf32>
    %60 = vector.extract_strided_slice %45 {offsets = [0, 2], sizes = [6, 1], strides = [1, 1]} : vector<6x10xf32> to vector<6x1xf32>
    %61 = vector.extract_strided_slice %44 {offsets = [2, 0], sizes = [1, 128], strides = [1, 1]} : vector<10x128xf32> to vector<1x128xf32>
    %62 = vector.broadcast %60 : vector<6x1xf32> to vector<6x128xf32>
    %63 = vector.broadcast %61 : vector<1x128xf32> to vector<6x128xf32>
    %64 = arith.mulf %62, %63 : vector<6x128xf32>
    %65 = arith.addf %59, %64 : vector<6x128xf32>
    %66 = vector.extract_strided_slice %45 {offsets = [0, 3], sizes = [6, 1], strides = [1, 1]} : vector<6x10xf32> to vector<6x1xf32>
    %67 = vector.extract_strided_slice %44 {offsets = [3, 0], sizes = [1, 128], strides = [1, 1]} : vector<10x128xf32> to vector<1x128xf32>
    %68 = vector.broadcast %66 : vector<6x1xf32> to vector<6x128xf32>
    %69 = vector.broadcast %67 : vector<1x128xf32> to vector<6x128xf32>
    %70 = arith.mulf %68, %69 : vector<6x128xf32>
    %71 = arith.addf %65, %70 : vector<6x128xf32>
    %72 = vector.extract_strided_slice %45 {offsets = [0, 4], sizes = [6, 1], strides = [1, 1]} : vector<6x10xf32> to vector<6x1xf32>
    %73 = vector.extract_strided_slice %44 {offsets = [4, 0], sizes = [1, 128], strides = [1, 1]} : vector<10x128xf32> to vector<1x128xf32>
    %74 = vector.broadcast %72 : vector<6x1xf32> to vector<6x128xf32>
    %75 = vector.broadcast %73 : vector<1x128xf32> to vector<6x128xf32>
    %76 = arith.mulf %74, %75 : vector<6x128xf32>
    %77 = arith.addf %71, %76 : vector<6x128xf32>
    %78 = vector.extract_strided_slice %45 {offsets = [0, 5], sizes = [6, 1], strides = [1, 1]} : vector<6x10xf32> to vector<6x1xf32>
    %79 = vector.extract_strided_slice %44 {offsets = [5, 0], sizes = [1, 128], strides = [1, 1]} : vector<10x128xf32> to vector<1x128xf32>
    %80 = vector.broadcast %78 : vector<6x1xf32> to vector<6x128xf32>
    %81 = vector.broadcast %79 : vector<1x128xf32> to vector<6x128xf32>
    %82 = arith.mulf %80, %81 : vector<6x128xf32>
    %83 = arith.addf %77, %82 : vector<6x128xf32>
    %84 = vector.extract_strided_slice %45 {offsets = [0, 6], sizes = [6, 1], strides = [1, 1]} : vector<6x10xf32> to vector<6x1xf32>
    %85 = vector.extract_strided_slice %44 {offsets = [6, 0], sizes = [1, 128], strides = [1, 1]} : vector<10x128xf32> to vector<1x128xf32>
    %86 = vector.broadcast %84 : vector<6x1xf32> to vector<6x128xf32>
    %87 = vector.broadcast %85 : vector<1x128xf32> to vector<6x128xf32>
    %88 = arith.mulf %86, %87 : vector<6x128xf32>
    %89 = arith.addf %83, %88 : vector<6x128xf32>
    %90 = vector.extract_strided_slice %45 {offsets = [0, 7], sizes = [6, 1], strides = [1, 1]} : vector<6x10xf32> to vector<6x1xf32>
    %91 = vector.extract_strided_slice %44 {offsets = [7, 0], sizes = [1, 128], strides = [1, 1]} : vector<10x128xf32> to vector<1x128xf32>
    %92 = vector.broadcast %90 : vector<6x1xf32> to vector<6x128xf32>
    %93 = vector.broadcast %91 : vector<1x128xf32> to vector<6x128xf32>
    %94 = arith.mulf %92, %93 : vector<6x128xf32>
    %95 = arith.addf %89, %94 : vector<6x128xf32>
    %96 = vector.extract_strided_slice %45 {offsets = [0, 8], sizes = [6, 1], strides = [1, 1]} : vector<6x10xf32> to vector<6x1xf32>
    %97 = vector.extract_strided_slice %44 {offsets = [8, 0], sizes = [1, 128], strides = [1, 1]} : vector<10x128xf32> to vector<1x128xf32>
    %98 = vector.broadcast %96 : vector<6x1xf32> to vector<6x128xf32>
    %99 = vector.broadcast %97 : vector<1x128xf32> to vector<6x128xf32>
    %100 = arith.mulf %98, %99 : vector<6x128xf32>
    %101 = arith.addf %95, %100 : vector<6x128xf32>
    %102 = vector.extract_strided_slice %45 {offsets = [0, 9], sizes = [6, 1], strides = [1, 1]} : vector<6x10xf32> to vector<6x1xf32>
    %103 = vector.extract_strided_slice %44 {offsets = [9, 0], sizes = [1, 128], strides = [1, 1]} : vector<10x128xf32> to vector<1x128xf32>
    %104 = vector.broadcast %102 : vector<6x1xf32> to vector<6x128xf32>
    %105 = vector.broadcast %103 : vector<1x128xf32> to vector<6x128xf32>
    %106 = arith.mulf %104, %105 : vector<6x128xf32>
    %107 = arith.addf %101, %106 : vector<6x128xf32>
    %108 = arith.negf %107 : vector<6x128xf32>
    %109 = math.exp %108 : vector<6x128xf32>
    %cst_9 = arith.constant 1.000000e+00 : f32
    %110 = vector.broadcast %cst_9 : f32 to vector<6x128xf32>
    %111 = arith.addf %110, %109 : vector<6x128xf32>
    %112 = arith.divf %110, %111 : vector<6x128xf32>
    %c0_10 = arith.constant 0 : index
    %c0_11 = arith.constant 0 : index
    %113 = vector.load %arg6[%c0_10, %c0_11] : memref<3x6xf32, #tpu.memory_space<vmem>>, vector<3x6xf32>
    %c0_12 = arith.constant 0 : index
    %c0_13 = arith.constant 0 : index
    %114 = vector.load %arg7[%c0_12, %c0_13] : memref<3x1xf32, #tpu.memory_space<vmem>>, vector<3x1xf32>
    %115 = vector.extract_strided_slice %113 {offsets = [0, 0], sizes = [3, 1], strides = [1, 1]} : vector<3x6xf32> to vector<3x1xf32>
    %116 = vector.extract_strided_slice %112 {offsets = [0, 0], sizes = [1, 128], strides = [1, 1]} : vector<6x128xf32> to vector<1x128xf32>
    %117 = vector.broadcast %115 : vector<3x1xf32> to vector<3x128xf32>
    %118 = vector.broadcast %116 : vector<1x128xf32> to vector<3x128xf32>
    %119 = arith.mulf %117, %118 : vector<3x128xf32>
    %120 = vector.broadcast %114 : vector<3x1xf32> to vector<3x128xf32>
    %121 = arith.addf %119, %120 : vector<3x128xf32>
    %122 = vector.extract_strided_slice %113 {offsets = [0, 1], sizes = [3, 1], strides = [1, 1]} : vector<3x6xf32> to vector<3x1xf32>
    %123 = vector.extract_strided_slice %112 {offsets = [1, 0], sizes = [1, 128], strides = [1, 1]} : vector<6x128xf32> to vector<1x128xf32>
    %124 = vector.broadcast %122 : vector<3x1xf32> to vector<3x128xf32>
    %125 = vector.broadcast %123 : vector<1x128xf32> to vector<3x128xf32>
    %126 = arith.mulf %124, %125 : vector<3x128xf32>
    %127 = arith.addf %121, %126 : vector<3x128xf32>
    %128 = vector.extract_strided_slice %113 {offsets = [0, 2], sizes = [3, 1], strides = [1, 1]} : vector<3x6xf32> to vector<3x1xf32>
    %129 = vector.extract_strided_slice %112 {offsets = [2, 0], sizes = [1, 128], strides = [1, 1]} : vector<6x128xf32> to vector<1x128xf32>
    %130 = vector.broadcast %128 : vector<3x1xf32> to vector<3x128xf32>
    %131 = vector.broadcast %129 : vector<1x128xf32> to vector<3x128xf32>
    %132 = arith.mulf %130, %131 : vector<3x128xf32>
    %133 = arith.addf %127, %132 : vector<3x128xf32>
    %134 = vector.extract_strided_slice %113 {offsets = [0, 3], sizes = [3, 1], strides = [1, 1]} : vector<3x6xf32> to vector<3x1xf32>
    %135 = vector.extract_strided_slice %112 {offsets = [3, 0], sizes = [1, 128], strides = [1, 1]} : vector<6x128xf32> to vector<1x128xf32>
    %136 = vector.broadcast %134 : vector<3x1xf32> to vector<3x128xf32>
    %137 = vector.broadcast %135 : vector<1x128xf32> to vector<3x128xf32>
    %138 = arith.mulf %136, %137 : vector<3x128xf32>
    %139 = arith.addf %133, %138 : vector<3x128xf32>
    %140 = vector.extract_strided_slice %113 {offsets = [0, 4], sizes = [3, 1], strides = [1, 1]} : vector<3x6xf32> to vector<3x1xf32>
    %141 = vector.extract_strided_slice %112 {offsets = [4, 0], sizes = [1, 128], strides = [1, 1]} : vector<6x128xf32> to vector<1x128xf32>
    %142 = vector.broadcast %140 : vector<3x1xf32> to vector<3x128xf32>
    %143 = vector.broadcast %141 : vector<1x128xf32> to vector<3x128xf32>
    %144 = arith.mulf %142, %143 : vector<3x128xf32>
    %145 = arith.addf %139, %144 : vector<3x128xf32>
    %146 = vector.extract_strided_slice %113 {offsets = [0, 5], sizes = [3, 1], strides = [1, 1]} : vector<3x6xf32> to vector<3x1xf32>
    %147 = vector.extract_strided_slice %112 {offsets = [5, 0], sizes = [1, 128], strides = [1, 1]} : vector<6x128xf32> to vector<1x128xf32>
    %148 = vector.broadcast %146 : vector<3x1xf32> to vector<3x128xf32>
    %149 = vector.broadcast %147 : vector<1x128xf32> to vector<3x128xf32>
    %150 = arith.mulf %148, %149 : vector<3x128xf32>
    %151 = arith.addf %145, %150 : vector<3x128xf32>
    %152 = arith.negf %151 : vector<3x128xf32>
    %153 = math.exp %152 : vector<3x128xf32>
    %cst_14 = arith.constant 1.000000e+00 : f32
    %154 = vector.broadcast %cst_14 : f32 to vector<3x128xf32>
    %155 = arith.addf %154, %153 : vector<3x128xf32>
    %156 = arith.divf %154, %155 : vector<3x128xf32>
    %c0_15 = arith.constant 0 : index
    %c0_16 = arith.constant 0 : index
    %157 = vector.load %arg8[%c0_15, %c0_16] : memref<1x3xf32, #tpu.memory_space<vmem>>, vector<1x3xf32>
    %c0_17 = arith.constant 0 : index
    %c0_18 = arith.constant 0 : index
    %158 = vector.load %arg9[%c0_17, %c0_18] : memref<1x1xf32, #tpu.memory_space<vmem>>, vector<1x1xf32>
    %159 = vector.extract_strided_slice %157 {offsets = [0, 0], sizes = [1, 1], strides = [1, 1]} : vector<1x3xf32> to vector<1x1xf32>
    %160 = vector.extract_strided_slice %156 {offsets = [0, 0], sizes = [1, 128], strides = [1, 1]} : vector<3x128xf32> to vector<1x128xf32>
    %161 = vector.broadcast %159 : vector<1x1xf32> to vector<1x128xf32>
    %162 = arith.mulf %161, %160 : vector<1x128xf32>
    %163 = vector.broadcast %158 : vector<1x1xf32> to vector<1x128xf32>
    %164 = arith.addf %162, %163 : vector<1x128xf32>
    %165 = vector.extract_strided_slice %157 {offsets = [0, 1], sizes = [1, 1], strides = [1, 1]} : vector<1x3xf32> to vector<1x1xf32>
    %166 = vector.extract_strided_slice %156 {offsets = [1, 0], sizes = [1, 128], strides = [1, 1]} : vector<3x128xf32> to vector<1x128xf32>
    %167 = vector.broadcast %165 : vector<1x1xf32> to vector<1x128xf32>
    %168 = arith.mulf %167, %166 : vector<1x128xf32>
    %169 = arith.addf %164, %168 : vector<1x128xf32>
    %170 = vector.extract_strided_slice %157 {offsets = [0, 2], sizes = [1, 1], strides = [1, 1]} : vector<1x3xf32> to vector<1x1xf32>
    %171 = vector.extract_strided_slice %156 {offsets = [2, 0], sizes = [1, 128], strides = [1, 1]} : vector<3x128xf32> to vector<1x128xf32>
    %172 = vector.broadcast %170 : vector<1x1xf32> to vector<1x128xf32>
    %173 = arith.mulf %172, %171 : vector<1x128xf32>
    %174 = arith.addf %169, %173 : vector<1x128xf32>
    %175 = arith.negf %174 : vector<1x128xf32>
    %176 = math.exp %175 : vector<1x128xf32>
    %cst_19 = arith.constant 1.000000e+00 : f32
    %177 = vector.broadcast %cst_19 : f32 to vector<1x128xf32>
    %178 = arith.addf %177, %176 : vector<1x128xf32>
    %179 = arith.divf %177, %178 : vector<1x128xf32>
    %c0_20 = arith.constant 0 : index
    %c0_21 = arith.constant 0 : index
    %180 = vector.load %arg10[%c0_20, %c0_21] : memref<1x128xf32, #tpu.memory_space<vmem>>, vector<1x128xf32>
    tpu.vector_store %arg10[%c0_20, %c0_21], %179 {strides = array<i32>} : memref<1x128xf32, #tpu.memory_space<vmem>>, vector<1x128xf32>,
    return
  }
  func.func @transform_0(%arg0: i32) -> (i32, i32) {
    %c0_i32 = arith.constant 0 : i32
    %c0_i32_0 = arith.constant 0 : i32
    return %c0_i32, %arg0 : i32, i32
  }
  func.func @transform_1(%arg0: i32) -> (i32, i32) {
    %c0_i32 = arith.constant 0 : i32
    %c0_i32_0 = arith.constant 0 : i32
    %c0_i32_1 = arith.constant 0 : i32
    return %c0_i32, %c0_i32_0 : i32, i32
  }
  func.func @transform_2(%arg0: i32) -> (i32, i32) {
    %c0_i32 = arith.constant 0 : i32
    %c0_i32_0 = arith.constant 0 : i32
    %c0_i32_1 = arith.constant 0 : i32
    return %c0_i32, %c0_i32_0 : i32, i32
  }
  func.func @transform_3(%arg0: i32) -> (i32, i32) {
    %c0_i32 = arith.constant 0 : i32
    %c0_i32_0 = arith.constant 0 : i32
    %c0_i32_1 = arith.constant 0 : i32
    return %c0_i32, %c0_i32_0 : i32, i32
  }
  func.func @transform_4(%arg0: i32) -> (i32, i32) {
    %c0_i32 = arith.constant 0 : i32
    %c0_i32_0 = arith.constant 0 : i32
    %c0_i32_1 = arith.constant 0 : i32
    return %c0_i32, %c0_i32_0 : i32, i32
  }
  func.func @transform_5(%arg0: i32) -> (i32, i32) {
    %c0_i32 = arith.constant 0 : i32
    %c0_i32_0 = arith.constant 0 : i32
    %c0_i32_1 = arith.constant 0 : i32
    return %c0_i32, %c0_i32_0 : i32, i32
  }
  func.func @transform_6(%arg0: i32) -> (i32, i32) {
    %c0_i32 = arith.constant 0 : i32
    %c0_i32_0 = arith.constant 0 : i32
    %c0_i32_1 = arith.constant 0 : i32
    return %c0_i32, %c0_i32_0 : i32, i32
  }
  func.func @transform_7(%arg0: i32) -> (i32, i32) {
    %c0_i32 = arith.constant 0 : i32
    %c0_i32_0 = arith.constant 0 : i32
    %c0_i32_1 = arith.constant 0 : i32
    return %c0_i32, %c0_i32_0 : i32, i32
  }
  func.func @transform_8(%arg0: i32) -> (i32, i32) {
    %c0_i32 = arith.constant 0 : i32
    %c0_i32_0 = arith.constant 0 : i32
    %c0_i32_1 = arith.constant 0 : i32
    return %c0_i32, %c0_i32_0 : i32, i32
  }
  func.func @transform_9(%arg0: i32) -> (i32, i32) {
    %c0_i32 = arith.constant 0 : i32
    %c0_i32_0 = arith.constant 0 : i32
    return %c0_i32, %arg0 : i32, i32
  }
}

</mosaic_0001>

<llo_original>
// kernel: mlp_forward.1
$region0: #{mlp_forward.1}
  #allocation0 [shape = 'u32[]', space=smem, size = 0x4, offset = 0x4, fixed_abs, tag = 'smem constant byte address 0x4 - core index']
  #allocation1 [shape = 'u32[144,128]{1,0:T(1,128)}', space=vmem, size = 0x12000, scoped, tag = 'internal scratch']
  #allocation2 [shape = 'f32[1,1]{1,0:T(1,128)S(1)}', space=vmem, size = 0x200, scoped, tag = 'scoped memory for mlp_forward.1']
  %s0 = inlined_call_operand.vmem [shape: f32[6,128], index: 0, kind: input, shape index: {}]
  %s1 = inlined_call_operand.vmem [shape: f32[10,6], index: 1, kind: input, shape index: {}]
  %s2 = inlined_call_operand.vmem [shape: f32[10,1], index: 2, kind: input, shape index: {}]
  %s3 = inlined_call_operand.vmem [shape: f32[6,10], index: 3, kind: input, shape index: {}]
  %s4 = inlined_call_operand.vmem [shape: f32[6,1], index: 4, kind: input, shape index: {}]
  %s5 = inlined_call_operand.vmem [shape: f32[3,6], index: 5, kind: input, shape index: {}]
  %s6 = inlined_call_operand.vmem [shape: f32[3,1], index: 6, kind: input, shape index: {}]
  %s7 = inlined_call_operand.vmem [shape: f32[1,3], index: 7, kind: input, shape index: {}]
  %s8 = inlined_call_operand.<no memory space> [shape: f32[1,1], index: 8, kind: input, shape index: {}]
  %s9 = inlined_call_operand.vmem [shape: f32[1,128], index: 9, kind: output, shape index: {}]
  %s10 = sld [smem:[#allocation0]]
  $region46: #{mlp_forward.1} parent=0
    _
  %s12 = ssub.s32 1, %s10
  %s13 = scalar_select 0, %s12, %s10
  %v14 = vstv %s8
  %15 = vst [vmem:[#allocation2] sm:$0x1] %v14
  // Predicated region
  $region2: #{mlp_forward.1} parent=0 // pred_check
    _
  $region3: #{mlp_forward.1} parent=0 // pred_check_branch
    %17 = sbr.rel (0) target = $region5
  $region4: #{mlp_forward.1} parent=0 // pred_region
    _
  $region5: #{mlp_forward.1} parent=0 // pred_fallthru
    _
  // Predicated region
  $region6: #{mlp_forward.1} parent=0 // pred_check
    _
  $region7: #{mlp_forward.1} parent=0 // pred_check_branch
    %19 = sbr.rel (0) target = $region9
  $region8: #{mlp_forward.1} parent=0 // pred_region
    _
  $region9: #{mlp_forward.1} parent=0 // pred_fallthru
    _
  // Predicated region
  $region10: #{mlp_forward.1} parent=0 // pred_check
    _
  $region11: #{mlp_forward.1} parent=0 // pred_check_branch
    %21 = sbr.rel (0) target = $region13
  $region12: #{mlp_forward.1} parent=0 // pred_region
    _
  $region13: #{mlp_forward.1} parent=0 // pred_fallthru
    _
  // Predicated region
  $region14: #{mlp_forward.1} parent=0 // pred_check
    _
  $region15: #{mlp_forward.1} parent=0 // pred_check_branch
    %23 = sbr.rel (0) target = $region17
  $region16: #{mlp_forward.1} parent=0 // pred_region
    _
  $region17: #{mlp_forward.1} parent=0 // pred_fallthru
    _
  // Predicated region
  $region18: #{mlp_forward.1} parent=0 // pred_check
    _
  $region19: #{mlp_forward.1} parent=0 // pred_check_branch
    %25 = sbr.rel (0) target = $region21
  $region20: #{mlp_forward.1} parent=0 // pred_region
    _
  $region21: #{mlp_forward.1} parent=0 // pred_fallthru
    _
  // Predicated region
  $region22: #{mlp_forward.1} parent=0 // pred_check
    _
  $region23: #{mlp_forward.1} parent=0 // pred_check_branch
    %27 = sbr.rel (0) target = $region25
  $region24: #{mlp_forward.1} parent=0 // pred_region
    _
  $region25: #{mlp_forward.1} parent=0 // pred_fallthru
    _
  // Predicated region
  $region26: #{mlp_forward.1} parent=0 // pred_check
    _
  $region27: #{mlp_forward.1} parent=0 // pred_check_branch
    %29 = sbr.rel (0) target = $region29
  $region28: #{mlp_forward.1} parent=0 // pred_region
    _
  $region29: #{mlp_forward.1} parent=0 // pred_fallthru
    _
  // Predicated region
  $region30: #{mlp_forward.1} parent=0 // pred_check
    _
  $region31: #{mlp_forward.1} parent=0 // pred_check_branch
    %31 = sbr.rel (0) target = $region33
  $region32: #{mlp_forward.1} parent=0 // pred_region
    _
  $region33: #{mlp_forward.1} parent=0 // pred_fallthru
    _
  // Predicated region
  $region34: #{mlp_forward.1} parent=0 // pred_check
    _
  $region35: #{mlp_forward.1} parent=0 // pred_check_branch
    %33 = sbr.rel (0) target = $region37
  $region36: #{mlp_forward.1} parent=0 // pred_region
    _
  $region37: #{mlp_forward.1} parent=0 // pred_fallthru
    _
  %v34 = vld [vmem:[%s0] sm:$0x3f]
  %v35 = vld [vmem:[%s1] sm:$0xff]
  %v36 = vld [vmem:[%s1 + $0x8] sm:$0x3]
  %v37 = vld [vmem:[%s2] sm:$0xff]
  %v38 = vld [vmem:[%s2 + $0x8] sm:$0x3]
  %40 = vset.pattern.permute.xlu0 0
  %41 = vperm.xlu0 %40, %v35
  %v42 = vpop.permute.xlu0 %41
  %45 = vset.pattern.permute.xlu0 0
  %46 = vperm.xlu0 %45, %v36
  %v47 = vpop.permute.xlu0 %46
  %v49 = vlaneseq
  %v50 = vshrl.u32 %v49, 7
  %v51 = vsub.s32 0, %v50
  %v52 = vrot.slane %v34, %v51
  %v53 = vmul.f32 %v42, %v52
  %v54 = vmul.f32 %v47, %v52
  %56 = vset.pattern.permute.xlu0 0
  %57 = vperm.xlu0 %56, %v37
  %v58 = vpop.permute.xlu0 %57
  %61 = vset.pattern.permute.xlu0 0
  %62 = vperm.xlu0 %61, %v38
  %v63 = vpop.permute.xlu0 %62
  %v65 = vadd.f32 %v53, %v58
  %v66 = vadd.f32 %v54, %v63
  %67 = vset.pattern.permute.xlu0 1
  %68 = vperm.xlu0 %67, %v35
  %v69 = vpop.permute.xlu0 %68
  %71 = vset.pattern.permute.xlu0 1
  %72 = vperm.xlu0 %71, %v36
  %v73 = vpop.permute.xlu0 %72
  %v75 = vlaneseq
  %v76 = vshrl.u32 %v75, 7
  %v77 = vsub.s32 1, %v76
  %v78 = vrot.slane %v34, %v77
  %v79 = vmul.f32 %v69, %v78
  %v80 = vmul.f32 %v73, %v78
  %v81 = vadd.f32 %v65, %v79
  %v82 = vadd.f32 %v66, %v80
  %83 = vset.pattern.permute.xlu0 2
  %84 = vperm.xlu0 %83, %v35
  %v85 = vpop.permute.xlu0 %84
  %87 = vset.pattern.permute.xlu0 2
  %88 = vperm.xlu0 %87, %v36
  %v89 = vpop.permute.xlu0 %88
  %v91 = vlaneseq
  %v92 = vshrl.u32 %v91, 7
  %v93 = vsub.s32 2, %v92
  %v94 = vrot.slane %v34, %v93
  %v95 = vmul.f32 %v85, %v94
  %v96 = vmul.f32 %v89, %v94
  %v97 = vadd.f32 %v81, %v95
  %v98 = vadd.f32 %v82, %v96
  %99 = vset.pattern.permute.xlu0 3
  %100 = vperm.xlu0 %99, %v35
  %v101 = vpop.permute.xlu0 %100
  %103 = vset.pattern.permute.xlu0 3
  %104 = vperm.xlu0 %103, %v36
  %v105 = vpop.permute.xlu0 %104
  %v107 = vlaneseq
  %v108 = vshrl.u32 %v107, 7
  %v109 = vsub.s32 3, %v108
  %v110 = vrot.slane %v34, %v109
  %v111 = vmul.f32 %v101, %v110
  %v112 = vmul.f32 %v105, %v110
  %v113 = vadd.f32 %v97, %v111
  %v114 = vadd.f32 %v98, %v112
  %115 = vset.pattern.permute.xlu0 4
  %116 = vperm.xlu0 %115, %v35
  %v117 = vpop.permute.xlu0 %116
  %119 = vset.pattern.permute.xlu0 4
  %120 = vperm.xlu0 %119, %v36
  %v121 = vpop.permute.xlu0 %120
  %v123 = vlaneseq
  %v124 = vshrl.u32 %v123, 7
  %v125 = vsub.s32 4, %v124
  %v126 = vrot.slane %v34, %v125
  %v127 = vmul.f32 %v117, %v126
  %v128 = vmul.f32 %v121, %v126
  %v129 = vadd.f32 %v113, %v127
  %v130 = vadd.f32 %v114, %v128
  %131 = vset.pattern.permute.xlu0 5
  %132 = vperm.xlu0 %131, %v35
  %v133 = vpop.permute.xlu0 %132
  %135 = vset.pattern.permute.xlu0 5
  %136 = vperm.xlu0 %135, %v36
  %v137 = vpop.permute.xlu0 %136
  %v139 = vlaneseq
  %v140 = vshrl.u32 %v139, 7
  %v141 = vsub.s32 5, %v140
  %v142 = vrot.slane %v34, %v141
  %v143 = vmul.f32 %v133, %v142
  %v144 = vmul.f32 %v137, %v142
  %v145 = vadd.f32 %v129, %v143
  %v146 = vadd.f32 %v130, %v144
  %v147 = vxor.u32 %v145, 2147483648
  %v148 = vxor.u32 %v146, 2147483648
  %v149 = vmul.f32 %v147, 1.442695
  %v150 = vpow.pop %v149
  %v151 = vmul.f32 %v148, 1.442695
  %v152 = vpow.pop %v151
  %v153 = vadd.f32 %v150, 1.0
  %v154 = vadd.f32 %v152, 1.0
  %v155 = vrcp.pop %v153
  %v156 = vmul.f32 1.0, %v155
  %v157 = vrcp.pop %v154
  %v158 = vmul.f32 1.0, %v157
  %v159 = vld [vmem:[%s3] sm:$0x3f]
  %v160 = vld [vmem:[%s4] sm:$0x3f]
  %162 = vset.pattern.permute.xlu0 0
  %163 = vperm.xlu0 %162, %v159
  %v164 = vpop.permute.xlu0 %163
  %v166 = vlaneseq
  %v167 = vshrl.u32 %v166, 7
  %v168 = vsub.s32 0, %v167
  %v169 = vrot.slane %v156, %v168
  %v170 = vmul.f32 %v164, %v169
  %172 = vset.pattern.permute.xlu0 0
  %173 = vperm.xlu0 %172, %v160
  %v174 = vpop.permute.xlu0 %173
  %v176 = vadd.f32 %v170, %v174
  %177 = vset.pattern.permute.xlu0 1
  %178 = vperm.xlu0 %177, %v159
  %v179 = vpop.permute.xlu0 %178
  %v181 = vlaneseq
  %v182 = vshrl.u32 %v181, 7
  %v183 = vsub.s32 1, %v182
  %v184 = vrot.slane %v156, %v183
  %v185 = vmul.f32 %v179, %v184
  %v186 = vadd.f32 %v176, %v185
  %187 = vset.pattern.permute.xlu0 2
  %188 = vperm.xlu0 %187, %v159
  %v189 = vpop.permute.xlu0 %188
  %v191 = vlaneseq
  %v192 = vshrl.u32 %v191, 7
  %v193 = vsub.s32 2, %v192
  %v194 = vrot.slane %v156, %v193
  %v195 = vmul.f32 %v189, %v194
  %v196 = vadd.f32 %v186, %v195
  %197 = vset.pattern.permute.xlu0 3
  %198 = vperm.xlu0 %197, %v159
  %v199 = vpop.permute.xlu0 %198
  %v201 = vlaneseq
  %v202 = vshrl.u32 %v201, 7
  %v203 = vsub.s32 3, %v202
  %v204 = vrot.slane %v156, %v203
  %v205 = vmul.f32 %v199, %v204
  %v206 = vadd.f32 %v196, %v205
  %207 = vset.pattern.permute.xlu0 4
  %208 = vperm.xlu0 %207, %v159
  %v209 = vpop.permute.xlu0 %208
  %v211 = vlaneseq
  %v212 = vshrl.u32 %v211, 7
  %v213 = vsub.s32 4, %v212
  %v214 = vrot.slane %v156, %v213
  %v215 = vmul.f32 %v209, %v214
  %v216 = vadd.f32 %v206, %v215
  %217 = vset.pattern.permute.xlu0 5
  %218 = vperm.xlu0 %217, %v159
  %v219 = vpop.permute.xlu0 %218
  %v221 = vlaneseq
  %v222 = vshrl.u32 %v221, 7
  %v223 = vsub.s32 5, %v222
  %v224 = vrot.slane %v156, %v223
  %v225 = vmul.f32 %v219, %v224
  %v226 = vadd.f32 %v216, %v225
  %227 = vset.pattern.permute.xlu0 6
  %228 = vperm.xlu0 %227, %v159
  %v229 = vpop.permute.xlu0 %228
  %v231 = vlaneseq
  %v232 = vshrl.u32 %v231, 7
  %v233 = vsub.s32 6, %v232
  %v234 = vrot.slane %v156, %v233
  %v235 = vmul.f32 %v229, %v234
  %v236 = vadd.f32 %v226, %v235
  %237 = vset.pattern.permute.xlu0 7
  %238 = vperm.xlu0 %237, %v159
  %v239 = vpop.permute.xlu0 %238
  %v241 = vlaneseq
  %v242 = vshrl.u32 %v241, 7
  %v243 = vsub.s32 7, %v242
  %v244 = vrot.slane %v156, %v243
  %v245 = vmul.f32 %v239, %v244
  %v246 = vadd.f32 %v236, %v245
  %247 = vset.pattern.permute.xlu0 8
  %248 = vperm.xlu0 %247, %v159
  %v249 = vpop.permute.xlu0 %248
  %v251 = vlaneseq
  %v252 = vshrl.u32 %v251, 7
  %v253 = vsub.s32 0, %v252
  %v254 = vrot.slane %v158, %v253
  %v255 = vmul.f32 %v249, %v254
  %v256 = vadd.f32 %v246, %v255
  %257 = vset.pattern.permute.xlu0 9
  %258 = vperm.xlu0 %257, %v159
  %v259 = vpop.permute.xlu0 %258
  %v261 = vlaneseq
  %v262 = vshrl.u32 %v261, 7
  %v263 = vsub.s32 1, %v262
  %v264 = vrot.slane %v158, %v263
  %v265 = vmul.f32 %v259, %v264
  %v266 = vadd.f32 %v256, %v265
  %v267 = vxor.u32 %v266, 2147483648
  %v268 = vmul.f32 %v267, 1.442695
  %v269 = vpow.pop %v268
  %v270 = vadd.f32 %v269, 1.0
  %v271 = vrcp.pop %v270
  %v272 = vmul.f32 1.0, %v271
  %v273 = vld [vmem:[%s5] sm:$0x7]
  %v274 = vld [vmem:[%s6] sm:$0x7]
  %276 = vset.pattern.permute.xlu0 0
  %277 = vperm.xlu0 %276, %v273
  %v278 = vpop.permute.xlu0 %277
  %v280 = vlaneseq
  %v281 = vshrl.u32 %v280, 7
  %v282 = vsub.s32 0, %v281
  %v283 = vrot.slane %v272, %v282
  %v284 = vmul.f32 %v278, %v283
  %286 = vset.pattern.permute.xlu0 0
  %287 = vperm.xlu0 %286, %v274
  %v288 = vpop.permute.xlu0 %287
  %v290 = vadd.f32 %v284, %v288
  %291 = vset.pattern.permute.xlu0 1
  %292 = vperm.xlu0 %291, %v273
  %v293 = vpop.permute.xlu0 %292
  %v295 = vlaneseq
  %v296 = vshrl.u32 %v295, 7
  %v297 = vsub.s32 1, %v296
  %v298 = vrot.slane %v272, %v297
  %v299 = vmul.f32 %v293, %v298
  %v300 = vadd.f32 %v290, %v299
  %301 = vset.pattern.permute.xlu0 2
  %302 = vperm.xlu0 %301, %v273
  %v303 = vpop.permute.xlu0 %302
  %v305 = vlaneseq
  %v306 = vshrl.u32 %v305, 7
  %v307 = vsub.s32 2, %v306
  %v308 = vrot.slane %v272, %v307
  %v309 = vmul.f32 %v303, %v308
  %v310 = vadd.f32 %v300, %v309
  %311 = vset.pattern.permute.xlu0 3
  %312 = vperm.xlu0 %311, %v273
  %v313 = vpop.permute.xlu0 %312
  %v315 = vlaneseq
  %v316 = vshrl.u32 %v315, 7
  %v317 = vsub.s32 3, %v316
  %v318 = vrot.slane %v272, %v317
  %v319 = vmul.f32 %v313, %v318
  %v320 = vadd.f32 %v310, %v319
  %321 = vset.pattern.permute.xlu0 4
  %322 = vperm.xlu0 %321, %v273
  %v323 = vpop.permute.xlu0 %322
  %v325 = vlaneseq
  %v326 = vshrl.u32 %v325, 7
  %v327 = vsub.s32 4, %v326
  %v328 = vrot.slane %v272, %v327
  %v329 = vmul.f32 %v323, %v328
  %v330 = vadd.f32 %v320, %v329
  %331 = vset.pattern.permute.xlu0 5
  %332 = vperm.xlu0 %331, %v273
  %v333 = vpop.permute.xlu0 %332
  %v335 = vlaneseq
  %v336 = vshrl.u32 %v335, 7
  %v337 = vsub.s32 5, %v336
  %v338 = vrot.slane %v272, %v337
  %v339 = vmul.f32 %v333, %v338
  %v340 = vadd.f32 %v330, %v339
  %v341 = vxor.u32 %v340, 2147483648
  %v342 = vmul.f32 %v341, 1.442695
  %v343 = vpow.pop %v342
  %v344 = vadd.f32 %v343, 1.0
  %v345 = vrcp.pop %v344
  %v346 = vmul.f32 1.0, %v345
  %v347 = vld [vmem:[%s7] sm:$0x1]
  %v348 = vld [vmem:[#allocation2] sm:$0x1]
  %350 = vset.pattern.permute.xlu0 0
  %351 = vperm.xlu0 %350, %v347
  %v352 = vpop.permute.xlu0 %351
  %v354 = vlaneseq
  %v355 = vshrl.u32 %v354, 7
  %v356 = vsub.s32 0, %v355
  %v357 = vrot.slane %v352, %v356
  %v358 = vmul.f32 %v357, %v346
  %360 = vset.pattern.permute.xlu0 0
  %361 = vperm.xlu0 %360, %v348
  %v362 = vpop.permute.xlu0 %361
  %v364 = vlaneseq
  %v365 = vshrl.u32 %v364, 7
  %v366 = vsub.s32 0, %v365
  %v367 = vrot.slane %v362, %v366
  %v368 = vadd.f32 %v358, %v367
  %369 = vset.pattern.permute.xlu0 1
  %370 = vperm.xlu0 %369, %v347
  %v371 = vpop.permute.xlu0 %370
  %v373 = vlaneseq
  %v374 = vshrl.u32 %v373, 7
  %v375 = vsub.s32 0, %v374
  %v376 = vrot.slane %v371, %v375
  %v377 = vmul.f32 %v376, %v346
  %v379 = vrot.slane %v377, 1
  %v381 = vadd.f32 %v368, %v379
  %382 = vset.pattern.permute.xlu0 2
  %383 = vperm.xlu0 %382, %v347
  %v384 = vpop.permute.xlu0 %383
  %v386 = vlaneseq
  %v387 = vshrl.u32 %v386, 7
  %v388 = vsub.s32 0, %v387
  %v389 = vrot.slane %v384, %v388
  %v390 = vmul.f32 %v389, %v346
  %v392 = vrot.slane %v390, 2
  %v394 = vadd.f32 %v381, %v392
  %v395 = vxor.u32 %v394, 2147483648
  %v396 = vmul.f32 %v395, 1.442695
  %v397 = vpow.pop %v396
  %v398 = vadd.f32 %v397, 1.0
  %v399 = vrcp.pop %v398
  %v400 = vmul.f32 1.0, %v399
  %401 = vst [vmem:[%s9] sm:$0x1] %v400
  // Predicated region
  $region38: #{mlp_forward.1} parent=0 // pred_check
    _
  $region39: #{mlp_forward.1} parent=0 // pred_check_branch
    %403 = sbr.rel (0) target = $region41
  $region40: #{mlp_forward.1} parent=0 // pred_region
    _
  $region41: #{mlp_forward.1} parent=0 // pred_fallthru
    _
  // Predicated region
  $region42: #{mlp_forward.1} parent=0 // pred_check
    _
  $region43: #{mlp_forward.1} parent=0 // pred_check_branch
    %405 = sbr.rel (0) target = $region45
  $region44: #{mlp_forward.1} parent=0 // pred_region
    _
  $region45: #{mlp_forward.1} parent=0 // pred_fallthru
    _

</llo_original>
